<compile_context>
chip_gen: v7x
topology: tpu7x:2x2x1
jax: 0.10.0
libtpu: 0.0.40
codegen_flags: <defaults>
</compile_context>

<pallas_src>
import jax
import jax.numpy as jnp
from jax.experimental import pallas as pl
from jax.experimental.pallas import tpu as pltpu

LANES = 128


def relu_kernel(x_ref, o_ref):
    # pure VPU elementwise max(x, 0); HBM bandwidth is the binding resource
    o_ref[...] = jnp.maximum(x_ref[...], 0)


def _chip_params():
    """Return (target_block_bytes, tensorcores_per_chip). Defensive query."""
    kind = ""
    try:
        kind = jax.devices()[0].device_kind.lower()
    except Exception:
        pass
    if "v7" in kind:
        # 2 TCs/chip, 32 MiB scoped VMEM default (64 MiB physical):
        # 4 x 5 MiB double-buffered blocks = 20 MiB -> safe, <5% step overhead.
        return 5 << 20, 2
    if "v6" in kind:
        # 1 TC, 32 MiB scoped default: 4 x 6 MiB = 24 MiB.
        return 6 << 20, 1
    if "v5" in kind:
        # v5e scoped default is only 16 MiB: 4 x 3 MiB = 12 MiB keeps headroom,
        # and at ~820 GB/s a 3 MiB block already makes step overhead negligible.
        return 3 << 20, 1
    # unknown backend: conservative setting valid everywhere.
    return 3 << 20, 1


def _relu_2d(x2d, *, donate=False):
    """Run the ReLU kernel on a lane-dense (rows, 128) array."""
    rows, lanes = x2d.shape
    dtype = x2d.dtype
    itemsize = jnp.dtype(dtype).itemsize

    # sub-32-bit dtypes pack along sublanes: keep tile rows a multiple of the
    # packed sublane tile so blocks stay (8*pack, 128)-aligned.
    pack = max(1, 4 // max(1, itemsize))
    row_align = 8 * pack

    target_block_bytes, num_tc = _chip_params()

    tile_rows = max(row_align, target_block_bytes // (lanes * itemsize))
    tile_rows = (tile_rows // row_align) * row_align
    if tile_rows >= rows:
        # single full-extent block (valid even if rows isn't 8*pack aligned)
        tile_rows = rows

    # Multi-TC chips (v7x): dimension_semantics=("parallel",) shards the grid
    # across cores, so make sure each core gets >= 2 steps (double-buffer
    # overlap) when the tensor is big enough.  Never force-split on 1-TC chips
    # (serial grid -> splitting a mem-bound op is pure overhead).
    steps_wanted = 2 * num_tc
    if (
        num_tc > 1
        and pl.cdiv(rows, tile_rows) < steps_wanted
        and rows >= steps_wanted * row_align
        and rows * lanes * itemsize >= steps_wanted * (256 << 10)
    ):
        split = pl.cdiv(rows, steps_wanted)
        split = max(row_align, ((split + row_align - 1) // row_align) * row_align)
        tile_rows = min(tile_rows, split)

    grid = (pl.cdiv(rows, tile_rows),)

    extra = {}
    if donate:
        # caller should also donate the buffer at the jit boundary
        extra["input_output_aliases"] = {0: 0}

    return pl.pallas_call(
        relu_kernel,
        out_shape=jax.ShapeDtypeStruct((rows, lanes), dtype),
        grid_spec=pltpu.PrefetchScalarGridSpec(
            num_scalar_prefetch=0,
            grid=grid,
            in_specs=[pl.BlockSpec((tile_rows, lanes), lambda i: (i, 0))],
            out_specs=pl.BlockSpec((tile_rows, lanes), lambda i: (i, 0)),
        ),
        compiler_params=pltpu.CompilerParams(
            dimension_semantics=("parallel",),
        ),
        cost_estimate=pl.CostEstimate(
            flops=rows * lanes,
            transcendentals=0,
            bytes_accessed=2 * rows * lanes * itemsize,
        ),
        **extra,
    )(x2d)


def relu_pallas(x: jax.Array, *, donate: bool = False) -> jax.Array:
    """Elementwise ReLU matching nn.ReLU() forward, any shape / dtype."""
    orig_shape = x.shape
    n = x.size
    if n == 0:
        return x

    x_flat = x.reshape(-1)
    n_main = (n // LANES) * LANES

    if n_main == 0:
        # fewer than 128 elements: a kernel launch isn't worth it
        return jnp.maximum(x_flat, 0).reshape(orig_shape)

    main = _relu_2d(
        x_flat[:n_main].reshape(n_main // LANES, LANES),
        donate=donate and n_main == n,
    )

    if n_main == n:
        return main.reshape(orig_shape)

    # <=127-element tail handled on the VPU outside the kernel (no full-array
    # pad copy, no post-kernel slice round trip)
    tail = jnp.maximum(x_flat[n_main:], 0)
    return jnp.concatenate([main.reshape(-1), tail]).reshape(orig_shape)


if __name__ == "__main__":
    key = jax.random.PRNGKey(0)

    # small NCHW input consistent with the module's forward
    x = jax.random.normal(key, (2, 4, 16, 16), dtype=jnp.float32)
    relu = jax.jit(relu_pallas)
    y = relu(x)
    jax.block_until_ready(y)
    assert y.shape == x.shape and y.dtype == x.dtype
    assert bool(jnp.allclose(y, jnp.maximum(x, 0.0))), "mismatch (f32 aligned path)"

    k1, k2 = jax.random.split(key)

    # non-128-multiple element count -> prefix kernel + tail path
    x_odd = jax.random.normal(k1, (2, 3, 67), dtype=jnp.float32)
    y_odd = relu_pallas(x_odd)
    jax.block_until_ready(y_odd)
    assert y_odd.shape == x_odd.shape and y_odd.dtype == x_odd.dtype
    assert bool(jnp.allclose(y_odd, jnp.maximum(x_odd, 0.0))), "mismatch (tail path)"

    # sublane-packed dtype (bf16)
    x_bf16 = jax.random.normal(k2, (4, 16, 16), dtype=jnp.bfloat16)
    y_bf16 = relu_pallas(x_bf16)
    jax.block_until_ready(y_bf16)
    assert y_bf16.dtype == jnp.bfloat16
    assert bool(jnp.all(y_bf16 == jnp.maximum(x_bf16, 0))), "mismatch (bf16 path)"

    print("KERNEL_OK")
</pallas_src>

<mosaic_0001>
module attributes {stable_mosaic.version = 11 : i64} {
  func.func @relu_kernel(%arg0: i32, %arg1: memref<16x128xf32, #tpu.memory_space<vmem>>, %arg2: memref<16x128xf32, #tpu.memory_space<vmem>>) attributes {dimension_semantics = [#tpu.dimension_semantics<parallel>], iteration_bounds = array<i64: 1>, scalar_prefetch = 0 : i64, scratch_operands = 0 : i64, tpu.core_type = #tpu.core_type<tc>, window_params = [{transform_indices = @transform_0, window_bounds = array<i64: 16, 128>}, {transform_indices = @transform_1, window_bounds = array<i64: 16, 128>}]} {
    %c0 = arith.constant 0 : index
    %c0_0 = arith.constant 0 : index
    %0 = vector.load %arg1[%c0, %c0_0] : memref<16x128xf32, #tpu.memory_space<vmem>>, vector<16x128xf32>
    %cst = arith.constant 0.000000e+00 : f32
    %1 = vector.broadcast %cst : f32 to vector<16x128xf32>
    %2 = arith.maximumf %0, %1 : vector<16x128xf32>
    %c0_1 = arith.constant 0 : index
    %c0_2 = arith.constant 0 : index
    %3 = vector.load %arg2[%c0_1, %c0_2] : memref<16x128xf32, #tpu.memory_space<vmem>>, vector<16x128xf32>
    tpu.vector_store %arg2[%c0_1, %c0_2], %2 {strides = array<i32>} : memref<16x128xf32, #tpu.memory_space<vmem>>, vector<16x128xf32>,
    return
  }
  func.func @transform_0(%arg0: i32) -> (i32, i32) {
    %c0_i32 = arith.constant 0 : i32
    %c0_i32_0 = arith.constant 0 : i32
    return %arg0, %c0_i32 : i32, i32
  }
  func.func @transform_1(%arg0: i32) -> (i32, i32) {
    %c0_i32 = arith.constant 0 : i32
    %c0_i32_0 = arith.constant 0 : i32
    return %arg0, %c0_i32 : i32, i32
  }
}

</mosaic_0001>

<llo_original>
// kernel: relu_pallas.1
$region0: #{relu_pallas.1}
  #allocation0 [shape = 'u32[]', space=smem, size = 0x4, offset = 0x4, fixed_abs, tag = 'smem constant byte address 0x4 - core index']
  #allocation1 [shape = 'u32[144,128]{1,0:T(1,128)}', space=vmem, size = 0x12000, scoped, tag = 'internal scratch']
  %s0 = inlined_call_operand.vmem [shape: f32[16,128], index: 0, kind: input, shape index: {}]
  %s1 = inlined_call_operand.vmem [shape: f32[16,128], index: 1, kind: output, shape index: {}]
  %s2 = sld [smem:[#allocation0]]
  $region14: #{relu_pallas.1} parent=0
    _
  %s4 = ssub.s32 1, %s2
  %s5 = scalar_select 0, %s4, %s2
  // Predicated region
  $region2: #{relu_pallas.1} parent=0 // pred_check
    _
  $region3: #{relu_pallas.1} parent=0 // pred_check_branch
    %7 = sbr.rel (0) target = $region5
  $region4: #{relu_pallas.1} parent=0 // pred_region
    _
  $region5: #{relu_pallas.1} parent=0 // pred_fallthru
    _
  %v8 = vld [vmem:[%s0] sm:$0xff]
  %v9 = vld [vmem:[%s0 + $0x8] sm:$0xff]
  %v10 = vmax.f32 %v8, 0.0
  %v11 = vmax.f32 %v9, 0.0
  %12 = vst [vmem:[%s1] sm:$0xff] %v10
  %13 = vst [vmem:[%s1 + $0x8] sm:$0xff] %v11
  // Predicated region
  $region6: #{relu_pallas.1} parent=0 // pred_check
    _
  $region7: #{relu_pallas.1} parent=0 // pred_check_branch
    %15 = sbr.rel (0) target = $region9
  $region8: #{relu_pallas.1} parent=0 // pred_region
    _
  $region9: #{relu_pallas.1} parent=0 // pred_fallthru
    _
  // Predicated region
  $region10: #{relu_pallas.1} parent=0 // pred_check
    _
  $region11: #{relu_pallas.1} parent=0 // pred_check_branch
    %17 = sbr.rel (0) target = $region13
  $region12: #{relu_pallas.1} parent=0 // pred_region
    _
  $region13: #{relu_pallas.1} parent=0 // pred_fallthru
    _

</llo_original>
